<compile_context>
chip_gen: v7x
topology: tpu7x:2x2x1
jax: 0.10.0
libtpu: 0.0.40
codegen_flags: <defaults>
</compile_context>

<pallas_src>
import jax
import jax.numpy as jnp
from jax.experimental import pallas as pl
from jax.experimental.pallas import tpu as pltpu


def _round_up(x, m):
    return ((x + m - 1) // m) * m


def word_lstm_cell_kernel(xh_ref, w_ref, b_ref, c0_ref, c1_ref):
    """One row tile: single fused MXU matmul + f32 gate math, lane-dense store.

    xh_ref : (tile_n, I+H)   bf16   [x | h0]
    w_ref  : (I+H, 3*Hp)     bf16   [W_f | W_i | W_g], each gate padded to Hp lanes
    b_ref  : (1, 3*Hp)       f32
    c0_ref : (tile_n, Hp)    f32
    c1_ref : (tile_n, Hp)    f32
    """
    hp = c1_ref.shape[-1]

    # Single fused matmul: x @ W_ih + h0 @ W_hh, accumulated in f32 on the MXU.
    gates = jnp.dot(xh_ref[...], w_ref[...], preferred_element_type=jnp.float32)
    gates = gates + b_ref[...]                      # bias added once (f32, VPU)

    # 128-lane-aligned gate views (Hp is a multiple of 128 -> no cross-lane work).
    f = gates[:, 0 * hp:1 * hp]
    i = gates[:, 1 * hp:2 * hp]
    g = gates[:, 2 * hp:3 * hp]

    # Gate math in f32: 2 sigmoids + 1 tanh on the EUP, mul/add on the VPU.
    c1 = jax.nn.sigmoid(f) * c0_ref[...] + jax.nn.sigmoid(i) * jnp.tanh(g)
    c1_ref[...] = c1.astype(c1_ref.dtype)


def word_lstm_cell(input_, h0, c0, weight_ih, weight_hh, bias, *, tile_n=16):
    """Batched WordLSTMCell forward.

    input_    : (N, I)   -- N independent word-cell rows (batch x word spans flattened)
    h0, c0    : (N, H)
    weight_ih : (I, 3H), weight_hh : (H, 3H), bias : (3H,)
    Returns c1: (N, H) float32
    """
    N, I = input_.shape
    H = h0.shape[1]
    K = I + H
    Hp = _round_up(max(H, 128), 128)          # lane-dense per-gate width
    Np = _round_up(N, tile_n)
    pad_g = Hp - H

    f32, bf16 = jnp.float32, jnp.bfloat16

    # ---- weight/bias packing (in real lattice-LSTM use, do this once per layer) ----
    w_cat = jnp.concatenate([weight_ih, weight_hh], axis=0).astype(f32)      # (K, 3H)
    w_packed = jnp.concatenate(
        [jnp.pad(w_cat[:, g * H:(g + 1) * H], ((0, 0), (0, pad_g)))
         for g in range(3)], axis=1).astype(bf16)                            # (K, 3Hp)
    b_packed = jnp.concatenate(
        [jnp.pad(bias[g * H:(g + 1) * H].astype(f32), (0, pad_g))
         for g in range(3)]).reshape(1, 3 * Hp)                              # (1, 3Hp)

    # ---- activations: fuse [x | h0]; pad rows to the tile and H to Hp lanes ----
    xh = jnp.concatenate([input_, h0], axis=1).astype(bf16)                  # (N, K)
    xh = jnp.pad(xh, ((0, Np - N), (0, 0)))                                  # (Np, K)
    c0_p = jnp.pad(c0.astype(f32), ((0, Np - N), (0, pad_g)))                # (Np, Hp)

    out = pl.pallas_call(
        word_lstm_cell_kernel,
        out_shape=jax.ShapeDtypeStruct((Np, Hp), f32),
        grid=(pl.cdiv(Np, tile_n),),
        in_specs=[
            pl.BlockSpec((tile_n, K), lambda n: (n, 0)),      # xh streams per tile
            pl.BlockSpec((K, 3 * Hp), lambda n: (0, 0)),      # weights pinned in VMEM
            pl.BlockSpec((1, 3 * Hp), lambda n: (0, 0)),      # bias pinned in VMEM
            pl.BlockSpec((tile_n, Hp), lambda n: (n, 0)),     # c0 streams per tile
        ],
        out_specs=pl.BlockSpec((tile_n, Hp), lambda n: (n, 0)),
        compiler_params=pltpu.CompilerParams(
            dimension_semantics=("parallel",),   # shard row tiles across TCs on v7x
        ),
    )(xh, w_packed, b_packed, c0_p)

    return out[:N, :H]


def init_params(key, input_size, hidden_size):
    """Deterministic init mirroring WordLSTMCell.reset_parameters()."""
    # weight_ih: orthogonal init, shape (input_size, 3H)
    a = jax.random.normal(key, (3 * hidden_size, input_size), dtype=jnp.float32)
    q, _ = jnp.linalg.qr(a)                       # (3H, input_size), orthonormal cols
    weight_ih = q.T                               # (input_size, 3H)
    # weight_hh: eye(H) repeated 3 times along columns -> (H, 3H)
    weight_hh = jnp.tile(jnp.eye(hidden_size, dtype=jnp.float32), (1, 3))
    # bias: zeros
    bias = jnp.zeros((3 * hidden_size,), dtype=jnp.float32)
    return weight_ih, weight_hh, bias


def reference(input_, h0, c0, weight_ih, weight_hh, bias):
    """Pure-JAX f32 reference of the PyTorch forward."""
    wh_b = bias[None, :] + h0 @ weight_hh
    wi = input_ @ weight_ih
    gates = wh_b + wi
    H = h0.shape[1]
    f, i, g = gates[:, :H], gates[:, H:2 * H], gates[:, 2 * H:]
    return jax.nn.sigmoid(f) * c0 + jax.nn.sigmoid(i) * jnp.tanh(g)


if __name__ == "__main__":
    INPUT_SIZE, HIDDEN_SIZE = 64, 32
    BATCH, NUM_WORD_CELLS = 8, 8                  # 64 independent rows, one pallas_call
    N = BATCH * NUM_WORD_CELLS

    key = jax.random.PRNGKey(0)
    k_w, k_x, k_h, k_c = jax.random.split(key, 4)

    weight_ih, weight_hh, bias = init_params(k_w, INPUT_SIZE, HIDDEN_SIZE)
    input_ = jax.random.normal(k_x, (N, INPUT_SIZE), dtype=jnp.float32)
    h0 = jax.random.normal(k_h, (N, HIDDEN_SIZE), dtype=jnp.float32)
    c0 = jax.random.normal(k_c, (N, HIDDEN_SIZE), dtype=jnp.float32)

    fn = jax.jit(word_lstm_cell, static_argnames=("tile_n",))
    c1 = jax.block_until_ready(fn(input_, h0, c0, weight_ih, weight_hh, bias))

    c1_ref = reference(input_, h0, c0, weight_ih, weight_hh, bias)
    assert c1.shape == (N, HIDDEN_SIZE)
    # bf16 MXU operands vs. f32 reference -> ~1e-2 relative error expected.
    assert jnp.allclose(c1, c1_ref, atol=5e-2, rtol=5e-2), "mismatch vs reference"

    print("KERNEL_OK")
</pallas_src>

<mosaic_0001>
module attributes {stable_mosaic.version = 11 : i64} {
  func.func @word_lstm_cell_kernel(%arg0: i32, %arg1: memref<16x96xbf16, #tpu.memory_space<vmem>>, %arg2: memref<96x384xbf16, #tpu.memory_space<vmem>>, %arg3: memref<1x384xf32, #tpu.memory_space<vmem>>, %arg4: memref<16x128xf32, #tpu.memory_space<vmem>>, %arg5: memref<16x128xf32, #tpu.memory_space<vmem>>) attributes {dimension_semantics = [#tpu.dimension_semantics<parallel>], iteration_bounds = array<i64: 4>, scalar_prefetch = 0 : i64, scratch_operands = 0 : i64, tpu.core_type = #tpu.core_type<tc>, window_params = [{transform_indices = @transform_0, window_bounds = array<i64: 16, 96>}, {pipeline_mode = #tpu.pipeline_mode<synchronous>, transform_indices = @transform_1, window_bounds = array<i64: 96, 384>}, {pipeline_mode = #tpu.pipeline_mode<synchronous>, transform_indices = @transform_2, window_bounds = array<i64: 1, 384>}, {transform_indices = @transform_3, window_bounds = array<i64: 16, 128>}, {transform_indices = @transform_4, window_bounds = array<i64: 16, 128>}]} {
    %c0 = arith.constant 0 : index
    %c0_0 = arith.constant 0 : index
    %0 = vector.load %arg1[%c0, %c0_0] : memref<16x96xbf16, #tpu.memory_space<vmem>>, vector<16x96xbf16>
    %c0_1 = arith.constant 0 : index
    %c0_2 = arith.constant 0 : index
    %1 = vector.load %arg2[%c0_1, %c0_2] : memref<96x384xbf16, #tpu.memory_space<vmem>>, vector<96x384xbf16>
    %cst = arith.constant dense<0.000000e+00> : vector<16x384xf32>
    %2 = tpu.matmul %0, %1, %cst {dimension_numbers = #tpu.dot_dimension_numbers<[1], [0], [0], [1], [0, 0, 1, 1], [], []>} : vector<16x96xbf16>, vector<96x384xbf16>, vector<16x384xf32> -> vector<16x384xf32>
    %c0_3 = arith.constant 0 : index
    %c0_4 = arith.constant 0 : index
    %3 = vector.load %arg3[%c0_3, %c0_4] : memref<1x384xf32, #tpu.memory_space<vmem>>, vector<1x384xf32>
    %4 = vector.broadcast %3 : vector<1x384xf32> to vector<16x384xf32>
    %5 = arith.addf %2, %4 : vector<16x384xf32>
    %6 = vector.extract_strided_slice %5 {offsets = [0, 0], sizes = [16, 128], strides = [1, 1]} : vector<16x384xf32> to vector<16x128xf32>
    %7 = vector.extract_strided_slice %5 {offsets = [0, 128], sizes = [16, 128], strides = [1, 1]} : vector<16x384xf32> to vector<16x128xf32>
    %8 = vector.extract_strided_slice %5 {offsets = [0, 256], sizes = [16, 128], strides = [1, 1]} : vector<16x384xf32> to vector<16x128xf32>
    %9 = arith.negf %6 : vector<16x128xf32>
    %10 = math.exp %9 : vector<16x128xf32>
    %cst_5 = arith.constant 1.000000e+00 : f32
    %11 = vector.broadcast %cst_5 : f32 to vector<16x128xf32>
    %12 = arith.addf %11, %10 : vector<16x128xf32>
    %13 = arith.divf %11, %12 : vector<16x128xf32>
    %c0_6 = arith.constant 0 : index
    %c0_7 = arith.constant 0 : index
    %14 = vector.load %arg4[%c0_6, %c0_7] : memref<16x128xf32, #tpu.memory_space<vmem>>, vector<16x128xf32>
    %15 = arith.mulf %13, %14 : vector<16x128xf32>
    %16 = arith.negf %7 : vector<16x128xf32>
    %17 = math.exp %16 : vector<16x128xf32>
    %cst_8 = arith.constant 1.000000e+00 : f32
    %18 = vector.broadcast %cst_8 : f32 to vector<16x128xf32>
    %19 = arith.addf %18, %17 : vector<16x128xf32>
    %20 = arith.divf %18, %19 : vector<16x128xf32>
    %21 = math.tanh %8 : vector<16x128xf32>
    %22 = arith.mulf %20, %21 : vector<16x128xf32>
    %23 = arith.addf %15, %22 : vector<16x128xf32>
    %c0_9 = arith.constant 0 : index
    %c0_10 = arith.constant 0 : index
    %24 = vector.load %arg5[%c0_9, %c0_10] : memref<16x128xf32, #tpu.memory_space<vmem>>, vector<16x128xf32>
    tpu.vector_store %arg5[%c0_9, %c0_10], %23 {strides = array<i32>} : memref<16x128xf32, #tpu.memory_space<vmem>>, vector<16x128xf32>,
    return
  }
  func.func @transform_0(%arg0: i32) -> (i32, i32) {
    %c0_i32 = arith.constant 0 : i32
    %c0_i32_0 = arith.constant 0 : i32
    return %arg0, %c0_i32 : i32, i32
  }
  func.func @transform_1(%arg0: i32) -> (i32, i32) {
    %c0_i32 = arith.constant 0 : i32
    %c0_i32_0 = arith.constant 0 : i32
    %c0_i32_1 = arith.constant 0 : i32
    return %c0_i32, %c0_i32_0 : i32, i32
  }
  func.func @transform_2(%arg0: i32) -> (i32, i32) {
    %c0_i32 = arith.constant 0 : i32
    %c0_i32_0 = arith.constant 0 : i32
    %c0_i32_1 = arith.constant 0 : i32
    return %c0_i32, %c0_i32_0 : i32, i32
  }
  func.func @transform_3(%arg0: i32) -> (i32, i32) {
    %c0_i32 = arith.constant 0 : i32
    %c0_i32_0 = arith.constant 0 : i32
    return %arg0, %c0_i32 : i32, i32
  }
  func.func @transform_4(%arg0: i32) -> (i32, i32) {
    %c0_i32 = arith.constant 0 : i32
    %c0_i32_0 = arith.constant 0 : i32
    return %arg0, %c0_i32 : i32, i32
  }
}

</mosaic_0001>

<llo_original>
// kernel: word_lstm_cell.1
$region0: #{word_lstm_cell.1}
  #allocation0 [shape = 'u32[]', space=smem, size = 0x4, offset = 0x4, fixed_abs, tag = 'smem constant byte address 0x4 - core index']
  #allocation1 [shape = 'u32[144,128]{1,0:T(1,128)}', space=vmem, size = 0x12000, scoped, tag = 'internal scratch']
  %s0 = inlined_call_operand.vmem [shape: bf16[64,96], index: 0, kind: input, shape index: {}]
  %s1 = inlined_call_operand.vmem [shape: bf16[96,384], index: 1, kind: input, shape index: {}]
  %s2 = inlined_call_operand.vmem [shape: f32[1,384], index: 2, kind: input, shape index: {}]
  %s3 = inlined_call_operand.vmem [shape: f32[64,128], index: 3, kind: input, shape index: {}]
  %s4 = inlined_call_operand.vmem [shape: f32[64,128], index: 4, kind: output, shape index: {}]
  %s5 = sld [smem:[#allocation0]]
  $region49: #{word_lstm_cell.1} parent=0
    _
  %s7 = ssub.s32 1, %s5
  %s8 = scalar_select 0, %s7, %s5
  loop: start=0, step=1, limit=6
  $region2: #{word_lstm_cell.1} parent=0 // loop_pre_header
    _
  $region3: #{word_lstm_cell.1} parent=0 // loop_header
    %s10 = sphi 0, %s14
    %p11 = scmp.ge.s32.totalorder %s10, 6
    %s20 = sphi 0, %s22
    %s23 = sphi 0, %s20
    %s24 = sphi 0, %s23
    %s40 = sphi 0, %s24
    %s44 = sphi 0, %s44
    %s46 = sphi 0, %s44
    %s47 = sphi 0, %s46
    %s61 = sphi 0, %s47
    %s65 = sphi 0, %s65
    %s67 = sphi 0, %s65
    %s68 = sphi 0, %s67
    %s82 = sphi 0, %s68
    %s88 = sphi 0, %s90
    %s91 = sphi 0, %s88
    %s92 = sphi 0, %s91
    %s108 = sphi 0, %s92
    %s114 = sphi 0, %s116
    %s117 = sphi 0, %s114
    %s118 = sphi 0, %s117
    %s134 = sphi 0, %s118
  $region4: #{word_lstm_cell.1} parent=0 // loop_header_branch
    %13 = sbr.rel (%p11) target = $region8
  $region5: #{word_lstm_cell.1} parent=0 // loop_body
    %s15 = ssub.s32 %s10, 1
    %s16 = ssub.s32 %s10, 2
    %s17 = sadd.s32 %s10, 1
    %s18 = ssub.s32 %s10, %s17
    %p19 = scmp.eq.s32.totalorder %s18, 0
    %s21 = sadd.s32 %s20, 1
    %s22 = scalar_select %p19, %s20, %s21
    %p25 = pneg %p19
    %p26 = scmp.eq.s32.totalorder %s10, 3
    %p27 = por %p25, %p26
    %p28 = scmp.ne.s32.totalorder %s20, %s23
    %p29 = scmp.eq.s32.totalorder %s10, 0
    %p30 = por %p28, %p29
    %p31 = scmp.ne.s32.totalorder %s20, %s23
    %p32 = scmp.eq.s32.totalorder %s15, 3
    %p33 = por %p31, %p32
    %p34 = scmp.ne.s32.totalorder %s23, %s24
    %p35 = scmp.eq.s32.totalorder %s15, 0
    %p36 = por %p34, %p35
    %p37 = scmp.ne.s32.totalorder %s23, %s24
    %p38 = scmp.eq.s32.totalorder %s16, 3
    %p39 = por %p37, %p38
    %p41 = scmp.ne.s32.totalorder %s24, %s40
    %p42 = scmp.eq.s32.totalorder %s16, 0
    %p43 = por %p41, %p42
    %s45 = sadd.s32 %s44, 1
    %p48 = scmp.eq.s32.totalorder %s10, 3
    %p49 = scmp.ne.s32.totalorder %s44, %s46
    %p50 = scmp.eq.s32.totalorder %s10, 0
    %p51 = por %p49, %p50
    %p52 = scmp.ne.s32.totalorder %s44, %s46
    %p53 = scmp.eq.s32.totalorder %s15, 3
    %p54 = por %p52, %p53
    %p55 = scmp.ne.s32.totalorder %s46, %s47
    %p56 = scmp.eq.s32.totalorder %s15, 0
    %p57 = por %p55, %p56
    %p58 = scmp.ne.s32.totalorder %s46, %s47
    %p59 = scmp.eq.s32.totalorder %s16, 3
    %p60 = por %p58, %p59
    %p62 = scmp.ne.s32.totalorder %s47, %s61
    %p63 = scmp.eq.s32.totalorder %s16, 0
    %p64 = por %p62, %p63
    %s66 = sadd.s32 %s65, 1
    %p69 = scmp.eq.s32.totalorder %s10, 3
    %p70 = scmp.ne.s32.totalorder %s65, %s67
    %p71 = scmp.eq.s32.totalorder %s10, 0
    %p72 = por %p70, %p71
    %p73 = scmp.ne.s32.totalorder %s65, %s67
    %p74 = scmp.eq.s32.totalorder %s15, 3
    %p75 = por %p73, %p74
    %p76 = scmp.ne.s32.totalorder %s67, %s68
    %p77 = scmp.eq.s32.totalorder %s15, 0
    %p78 = por %p76, %p77
    %p79 = scmp.ne.s32.totalorder %s67, %s68
    %p80 = scmp.eq.s32.totalorder %s16, 3
    %p81 = por %p79, %p80
    %p83 = scmp.ne.s32.totalorder %s68, %s82
    %p84 = scmp.eq.s32.totalorder %s16, 0
    %p85 = por %p83, %p84
    %s86 = ssub.s32 %s10, %s17
    %p87 = scmp.eq.s32.totalorder %s86, 0
    %s89 = sadd.s32 %s88, 1
    %s90 = scalar_select %p87, %s88, %s89
    %p93 = pneg %p87
    %p94 = scmp.eq.s32.totalorder %s10, 3
    %p95 = por %p93, %p94
    %p96 = scmp.ne.s32.totalorder %s88, %s91
    %p97 = scmp.eq.s32.totalorder %s10, 0
    %p98 = por %p96, %p97
    %p99 = scmp.ne.s32.totalorder %s88, %s91
    %p100 = scmp.eq.s32.totalorder %s15, 3
    %p101 = por %p99, %p100
    %p102 = scmp.ne.s32.totalorder %s91, %s92
    %p103 = scmp.eq.s32.totalorder %s15, 0
    %p104 = por %p102, %p103
    %p105 = scmp.ne.s32.totalorder %s91, %s92
    %p106 = scmp.eq.s32.totalorder %s16, 3
    %p107 = por %p105, %p106
    %p109 = scmp.ne.s32.totalorder %s92, %s108
    %p110 = scmp.eq.s32.totalorder %s16, 0
    %p111 = por %p109, %p110
    %s112 = ssub.s32 %s10, %s17
    %p113 = scmp.eq.s32.totalorder %s112, 0
    %s115 = sadd.s32 %s114, 1
    %s116 = scalar_select %p113, %s114, %s115
    %p119 = pneg %p113
    %p120 = scmp.eq.s32.totalorder %s10, 3
    %p121 = por %p119, %p120
    %p122 = scmp.ne.s32.totalorder %s114, %s117
    %p123 = scmp.eq.s32.totalorder %s10, 0
    %p124 = por %p122, %p123
    %p125 = scmp.ne.s32.totalorder %s114, %s117
    %p126 = scmp.eq.s32.totalorder %s15, 3
    %p127 = por %p125, %p126
    %p128 = scmp.ne.s32.totalorder %s117, %s118
    %p129 = scmp.eq.s32.totalorder %s15, 0
    %p130 = por %p128, %p129
    %p131 = scmp.ne.s32.totalorder %s117, %s118
    %p132 = scmp.eq.s32.totalorder %s16, 3
    %p133 = por %p131, %p132
    %p135 = scmp.ne.s32.totalorder %s118, %s134
    %p136 = scmp.eq.s32.totalorder %s16, 0
    %p137 = por %p135, %p136
    %p138 = scmp.le.s32.totalorder 1, %s10
    %p139 = scmp.lt.s32.totalorder %s10, 5
    %p140 = pnand %p138, %p139
    %p141 = pneg %p140
    // Predicated region
    $region9: #{word_lstm_cell.1} parent=5 // pred_check
      _
    $region10: #{word_lstm_cell.1} parent=5 // pred_check_branch
      %143 = sbr.rel (%p140) target = $region12
    $region11: #{word_lstm_cell.1} parent=5 // pred_region
      %s144 = ssub.s32 %s10, 1
      // Predicated region
      $region13: #{word_lstm_cell.1} parent=11 // pred_check
        %p145 = pneg %p57
      $region14: #{word_lstm_cell.1} parent=11 // pred_check_branch
        %147 = sbr.rel (%p145) target = $region16
      $region15: #{word_lstm_cell.1} parent=11 // pred_region
        _
      $region16: #{word_lstm_cell.1} parent=11 // pred_fallthru
        _
      // Predicated region
      $region17: #{word_lstm_cell.1} parent=11 // pred_check
        %p148 = pneg %p78
      $region18: #{word_lstm_cell.1} parent=11 // pred_check_branch
        %150 = sbr.rel (%p148) target = $region20
      $region19: #{word_lstm_cell.1} parent=11 // pred_region
        _
      $region20: #{word_lstm_cell.1} parent=11 // pred_fallthru
        _
    $region12: #{word_lstm_cell.1} parent=5 // pred_fallthru
      _
    %p151 = scmp.lt.s32.totalorder %s10, 4
    // Predicated region
    $region21: #{word_lstm_cell.1} parent=5 // pred_check
      %p152 = pneg %p151
    $region22: #{word_lstm_cell.1} parent=5 // pred_check_branch
      %154 = sbr.rel (%p152) target = $region24
    $region23: #{word_lstm_cell.1} parent=5 // pred_region
      // Predicated region
      $region25: #{word_lstm_cell.1} parent=23 // pred_check
        %p155 = pneg %p30
      $region26: #{word_lstm_cell.1} parent=23 // pred_check_branch
        %157 = sbr.rel (%p155) target = $region28
      $region27: #{word_lstm_cell.1} parent=23 // pred_region
        %s158 = smul.u32 2, %s10
        %p159 = scmp.lt.s32.totalorder %s158, 7
        %s160 = scalar_select %p159, %s158, 7
        %s161 = smul.addr %s160, 4
        %s162 = scalar_lea.vmem %s0, %s161
        %s163 = smul.u32 2, %s10
      $region28: #{word_lstm_cell.1} parent=23 // pred_fallthru
        _
      // Predicated region
      $region29: #{word_lstm_cell.1} parent=23 // pred_check
        %p164 = pneg %p98
      $region30: #{word_lstm_cell.1} parent=23 // pred_check_branch
        %166 = sbr.rel (%p164) target = $region32
      $region31: #{word_lstm_cell.1} parent=23 // pred_region
        %s167 = smul.u32 2, %s10
        %p168 = scmp.lt.s32.totalorder %s167, 7
        %s169 = scalar_select %p168, %s167, 7
        %s170 = smul.addr %s169, 8
        %s171 = scalar_lea.vmem %s3, %s170
        %s172 = smul.u32 2, %s10
      $region32: #{word_lstm_cell.1} parent=23 // pred_fallthru
        _
    $region24: #{word_lstm_cell.1} parent=5 // pred_fallthru
      _
    %p173 = scmp.le.s32.totalorder 1, %s10
    %p174 = scmp.lt.s32.totalorder %s10, 5
    %p175 = pnand %p173, %p174
    %p176 = pneg %p175
    // Predicated region
    $region33: #{word_lstm_cell.1} parent=5 // pred_check
      _
    $region34: #{word_lstm_cell.1} parent=5 // pred_check_branch
      %178 = sbr.rel (%p175) target = $region36
    $region35: #{word_lstm_cell.1} parent=5 // pred_region
      %s179 = ssub.s32 %s10, 1
      %s180 = smul.u32 2, %s15
      %p181 = scmp.lt.s32.totalorder %s180, 7
      %s182 = scalar_select %p181, %s180, 7
      %s183 = smul.addr %s182, 4
      %s184 = scalar_lea.vmem %s0, %s183
      %p185 = pneg %p36
      %p186 = pneg %p33
      %p187 = pneg %p57
      %p188 = pneg %p54
      %p189 = pneg %p78
      %p190 = pneg %p75
      %s191 = smul.u32 2, %s15
      %p192 = scmp.lt.s32.totalorder %s191, 7
      %s193 = scalar_select %p192, %s191, 7
      %s194 = smul.addr %s193, 8
      %s195 = scalar_lea.vmem %s3, %s194
      %p196 = pneg %p104
      %p197 = pneg %p101
      %p198 = pneg %p130
      %p199 = pneg %p127
      %s200 = smul.u32 2, %s15
      %p201 = scmp.lt.s32.totalorder %s200, 7
      %s202 = scalar_select %p201, %s200, 7
      %s203 = smul.addr %s202, 8
      %s204 = scalar_lea.vmem %s4, %s203
      %s205 = smul.u32 2, %s15
      %p206 = scmp.lt.s32.totalorder %s205, 7
      %s207 = scalar_select %p206, %s205, 7
      %s208 = smul.addr %s207, 4
      %s209 = scalar_lea.vmem %s0, %s208
      %s210 = smul.u32 2, %s15
      %s211 = smul.u32 2, %s15
      %p212 = scmp.lt.s32.totalorder %s211, 7
      %s213 = scalar_select %p212, %s211, 7
      %s214 = smul.addr %s213, 8
      %s215 = scalar_lea.vmem %s3, %s214
      %s216 = smul.u32 2, %s15
      %s217 = smul.u32 2, %s15
      %p218 = scmp.lt.s32.totalorder %s217, 7
      %s219 = scalar_select %p218, %s217, 7
      %s220 = smul.addr %s219, 8
      %s221 = scalar_lea.vmem %s4, %s220
      %s222 = smul.u32 2, %s15
      %v224 = vld [vmem:[%s209] sm:$0xf]
      %v225 = vld [vmem:[%s209 + $0x4] sm:$0xf]
      %v226 = vld [vmem:[%s1] sm:$0xff]
      %v227 = vld [vmem:[%s1 + $0x8] sm:$0xf]
      %v228 = vld [vmem:[%s1 + $0xc] sm:$0xff]
      %v229 = vld [vmem:[%s1 + $0x14] sm:$0xf]
      %v230 = vld [vmem:[%s1 + $0x18] sm:$0xff]
      %v231 = vld [vmem:[%s1 + $0x20] sm:$0xf]
      %v232 = vld [vmem:[%s1 + $0x24] sm:$0xff]
      %v233 = vld [vmem:[%s1 + $0x2c] sm:$0xf]
      %v234 = vld [vmem:[%s1 + $0x30] sm:$0xff]
      %v235 = vld [vmem:[%s1 + $0x38] sm:$0xf]
      %v236 = vld [vmem:[%s1 + $0x3c] sm:$0xff]
      %v237 = vld [vmem:[%s1 + $0x44] sm:$0xf]
      %v238 = vld [vmem:[%s1 + $0x48] sm:$0xff]
      %v239 = vld [vmem:[%s1 + $0x50] sm:$0xf]
      %v240 = vld [vmem:[%s1 + $0x54] sm:$0xff]
      %v241 = vld [vmem:[%s1 + $0x5c] sm:$0xf]
      %v242 = vld [vmem:[%s1 + $0x60] sm:$0xff]
      %v243 = vld [vmem:[%s1 + $0x68] sm:$0xf]
      %v244 = vld [vmem:[%s1 + $0x6c] sm:$0xff]
      %v245 = vld [vmem:[%s1 + $0x74] sm:$0xf]
      %v246 = vld [vmem:[%s1 + $0x78] sm:$0xff]
      %v247 = vld [vmem:[%s1 + $0x80] sm:$0xf]
      %v248 = vld [vmem:[%s1 + $0x84] sm:$0xff]
      %v249 = vld [vmem:[%s1 + $0x8c] sm:$0xf]
      %v250 = vld [vmem:[%s2] sm:$0x7]
      %v252 = vlaneseq
      %v253 = vshrl.u32 %v252, 7
      %v254 = vsub.s32 0, %v253
      %v255 = vrot.slane %v250, %v254
      %v256 = vlaneseq
      %v257 = vshrl.u32 %v256, 7
      %v258 = vsub.s32 1, %v257
      %v259 = vrot.slane %v250, %v258
      %v260 = vlaneseq
      %v261 = vshrl.u32 %v260, 7
      %v262 = vsub.s32 2, %v261
      %v263 = vrot.slane %v250, %v262
      %v269 = vunpack.c.l.b16 %v224
      %v270 = vunpack.c.l.b16 %v225
      %v271 = vpack.c.b16 %v270, %v269
      %v296 = vunpack.c.l.b16 %v226
      %v297 = vunpack.c.h.b16 %v226
      %v298 = vunpack.c.l.b16 %v227
      %v299 = vunpack.c.l.b16 %v228
      %v300 = vunpack.c.h.b16 %v228
      %v301 = vunpack.c.l.b16 %v229
      %v302 = vunpack.c.l.b16 %v230
      %v303 = vunpack.c.h.b16 %v230
      %v304 = vunpack.c.l.b16 %v231
      %v305 = vunpack.c.l.b16 %v232
      %v306 = vunpack.c.h.b16 %v232
      %v307 = vunpack.c.l.b16 %v233
      %v308 = vunpack.c.l.b16 %v234
      %v309 = vunpack.c.h.b16 %v234
      %v310 = vunpack.c.l.b16 %v235
      %v311 = vunpack.c.l.b16 %v236
      %v312 = vunpack.c.h.b16 %v236
      %v313 = vunpack.c.l.b16 %v237
      %v314 = vunpack.c.l.b16 %v238
      %v315 = vunpack.c.h.b16 %v238
      %v316 = vunpack.c.l.b16 %v239
      %v317 = vunpack.c.l.b16 %v240
      %v318 = vunpack.c.h.b16 %v240
      %v319 = vunpack.c.l.b16 %v241
      %v320 = vunpack.c.l.b16 %v242
      %v321 = vunpack.c.h.b16 %v242
      %v322 = vunpack.c.l.b16 %v243
      %v323 = vunpack.c.l.b16 %v244
      %v324 = vunpack.c.h.b16 %v244
      %v325 = vunpack.c.l.b16 %v245
      %v326 = vunpack.c.l.b16 %v246
      %v327 = vunpack.c.h.b16 %v246
      %v328 = vunpack.c.l.b16 %v247
      %v329 = vunpack.c.l.b16 %v248
      %v330 = vunpack.c.h.b16 %v248
      %v331 = vunpack.c.l.b16 %v249
      %v332 = vpack.c.b16 %v299, %v296
      %v333 = vpack.c.b16 %v300, %v297
      %v334 = vpack.c.b16 %v301, %v298
      %v335 = vpack.c.b16 %v305, %v302
      %v336 = vpack.c.b16 %v306, %v303
      %v337 = vpack.c.b16 %v307, %v304
      %v338 = vpack.c.b16 %v311, %v308
      %v339 = vpack.c.b16 %v312, %v309
      %v340 = vpack.c.b16 %v313, %v310
      %v341 = vpack.c.b16 %v317, %v314
      %v342 = vpack.c.b16 %v318, %v315
      %v343 = vpack.c.b16 %v319, %v316
      %v344 = vpack.c.b16 %v323, %v320
      %v345 = vpack.c.b16 %v324, %v321
      %v346 = vpack.c.b16 %v325, %v322
      %v347 = vpack.c.b16 %v329, %v326
      %v348 = vpack.c.b16 %v330, %v327
      %v349 = vpack.c.b16 %v331, %v328
      %vm368 = vcmask 785408
      %v370 = vsel %vm368, %v271, 0
      %372 = vmatprep.subr.bf16.mxu0 %v333
      %373 = vmatpush1.bf16.msra.mxu0 %v332
      %374 = vmatprep.subr.bf16.mxu0 %v336
      %375 = vmatpush1.bf16.msra.mxu0 %v335
      %376 = vmatprep.subr.bf16.mxu0 %v339
      %377 = vmatpush1.bf16.msra.mxu0 %v338
      %378 = vmatprep.subr.bf16.mxu0 %v342
      %379 = vmatpush1.bf16.msra.mxu0 %v341
      %380 = vmatprep.subr.bf16.mxu0 %v345
      %381 = vmatpush1.bf16.msra.mxu0 %v344
      %382 = vmatprep.subr.bf16.mxu0 %v348
      %383 = vmatpush1.bf16.msra.mxu0 %v347
      %384 = vmatprep.subr.bf16.mxu0 0
      %385 = vmatpush1.bf16.msra.mxu0 0
      %386 = vmatprep.subr.bf16.mxu0 0
      %387 = vmatpush1.bf16.msra.mxu0 0
      %388 = vmatprep.subr.bf16.mxu0 0
      %389 = vmatpush1.bf16.msra.mxu0 0
      %390 = vmatprep.subr.bf16.mxu0 0
      %391 = vmatpush1.bf16.msra.mxu0 0
      %392 = vmatprep.subr.bf16.mxu0 0
      %393 = vmatpush1.bf16.msra.mxu0 0
      %394 = vmatprep.subr.bf16.mxu0 0
      %395 = vmatpush1.bf16.msra.mxu0 0
      %396 = vmatprep.subr.bf16.mxu0 0
      %397 = vmatpush1.bf16.msra.mxu0 0
      %398 = vmatprep.subr.bf16.mxu0 0
      %399 = vmatpush1.bf16.msra.mxu0 0
      %400 = vmatprep.subr.bf16.mxu0 0
      %401 = vmatpush1.bf16.msra.mxu0 0
      %402 = vmatprep.subr.bf16.mxu0 0
      %403 = vmatpush1.bf16.msra.mxu0 0
      %404 = vmatprep.mubr.bf16.mxu0 0
      %405 = vmatmul.mubr.bf16.gmra.mrb[0].mxu0 %v370
      %v406 = vpop.f32.mrb[0].mxu0
      %v407 = vadd.f32 %v255, %v406
      %v408 = vpop.f32.mrb[0].mxu0
      %v409 = vadd.f32 %v259, %v408
      %v410 = vpop.f32.mrb[0].mxu0
      %v411 = vadd.f32 %v255, %v410
      %v412 = vpop.f32.mrb[0].mxu0
      %v413 = vadd.f32 %v259, %v412
      %414 = vdwg.mxu0
      %415 = vmatprep.subr.bf16.mxu0 0
      %416 = vmatpush1.bf16.msra.mxu0 %v334
      %417 = vmatprep.subr.bf16.mxu0 0
      %418 = vmatpush1.bf16.msra.mxu0 %v337
      %419 = vmatprep.subr.bf16.mxu0 0
      %420 = vmatpush1.bf16.msra.mxu0 %v340
      %421 = vmatprep.subr.bf16.mxu0 0
      %422 = vmatpush1.bf16.msra.mxu0 %v343
      %423 = vmatprep.subr.bf16.mxu0 0
      %424 = vmatpush1.bf16.msra.mxu0 %v346
      %425 = vmatprep.subr.bf16.mxu0 0
      %426 = vmatpush1.bf16.msra.mxu0 %v349
      %427 = vmatprep.subr.bf16.mxu0 0
      %428 = vmatpush1.bf16.msra.mxu0 0
      %429 = vmatprep.subr.bf16.mxu0 0
      %430 = vmatpush1.bf16.msra.mxu0 0
      %431 = vmatprep.subr.bf16.mxu0 0
      %432 = vmatpush1.bf16.msra.mxu0 0
      %433 = vmatprep.subr.bf16.mxu0 0
      %434 = vmatpush1.bf16.msra.mxu0 0
      %435 = vmatprep.subr.bf16.mxu0 0
      %436 = vmatpush1.bf16.msra.mxu0 0
      %437 = vmatprep.subr.bf16.mxu0 0
      %438 = vmatpush1.bf16.msra.mxu0 0
      %439 = vmatprep.subr.bf16.mxu0 0
      %440 = vmatpush1.bf16.msra.mxu0 0
      %441 = vmatprep.subr.bf16.mxu0 0
      %442 = vmatpush1.bf16.msra.mxu0 0
      %443 = vmatprep.subr.bf16.mxu0 0
      %444 = vmatpush1.bf16.msra.mxu0 0
      %445 = vmatprep.subr.bf16.mxu0 0
      %446 = vmatpush1.bf16.msra.mxu0 0
      %447 = vmatprep.mubr.bf16.mxu0 0
      %448 = vmatmul.mubr.bf16.gmra.mrb[0].mxu0 %v370
      %v449 = vpop.f32.mrb[0].mxu0
      %v450 = vadd.f32 %v263, %v449
      %v451 = vpop.f32.mrb[0].mxu0
      %v452 = vpop.f32.mrb[0].mxu0
      %v453 = vadd.f32 %v263, %v452
      %v454 = vpop.f32.mrb[0].mxu0
      %455 = vdwg.mxu0
      %v456 = vxor.u32 %v407, 2147483648
      %v457 = vxor.u32 %v411, 2147483648
      %v458 = vmul.f32 %v456, 1.442695
      %v459 = vpow.pop %v458
      %v460 = vmul.f32 %v457, 1.442695
      %v461 = vpow.pop %v460
      %v462 = vadd.f32 %v459, 1.0
      %v463 = vadd.f32 %v461, 1.0
      %v464 = vrcp.pop %v462
      %v465 = vmul.f32 1.0, %v464
      %v466 = vrcp.pop %v463
      %v467 = vmul.f32 1.0, %v466
      %v468 = vld [vmem:[%s215] sm:$0xff]
      %v469 = vld [vmem:[%s215 + $0x8] sm:$0xff]
      %v470 = vmul.f32 %v465, %v468
      %v471 = vmul.f32 %v467, %v469
      %v472 = vxor.u32 %v409, 2147483648
      %v473 = vxor.u32 %v413, 2147483648
      %v474 = vmul.f32 %v472, 1.442695
      %v475 = vpow.pop %v474
      %v476 = vmul.f32 %v473, 1.442695
      %v477 = vpow.pop %v476
      %v478 = vadd.f32 %v475, 1.0
      %v479 = vadd.f32 %v477, 1.0
      %v480 = vrcp.pop %v478
      %v481 = vmul.f32 1.0, %v480
      %v482 = vrcp.pop %v479
      %v483 = vmul.f32 1.0, %v482
      %v484 = vtanh.pop %v450
      %v485 = vtanh.pop %v453
      %v486 = vmul.f32 %v481, %v484
      %v487 = vmul.f32 %v483, %v485
      %v488 = vadd.f32 %v470, %v486
      %v489 = vadd.f32 %v471, %v487
      %490 = vst [vmem:[%s221] sm:$0xff] %v488
      %491 = vst [vmem:[%s221 + $0x8] sm:$0xff] %v489
      %s492 = smul.u32 2, %s15
      %p493 = scmp.lt.s32.totalorder %s492, 7
      %s494 = scalar_select %p493, %s492, 7
      %s495 = smul.addr %s494, 8
      %s496 = scalar_lea.vmem %s4, %s495
      // Predicated region
      $region37: #{word_lstm_cell.1} parent=35 // pred_check
        %p497 = pneg %p127
      $region38: #{word_lstm_cell.1} parent=35 // pred_check_branch
        %499 = sbr.rel (%p497) target = $region40
      $region39: #{word_lstm_cell.1} parent=35 // pred_region
        %s500 = smul.u32 2, %s15
      $region40: #{word_lstm_cell.1} parent=35 // pred_fallthru
        _
    $region36: #{word_lstm_cell.1} parent=5 // pred_fallthru
      _
    %p501 = scmp.le.s32.totalorder 2, %s10
    // Predicated region
    $region41: #{word_lstm_cell.1} parent=5 // pred_check
      %p502 = pneg %p501
    $region42: #{word_lstm_cell.1} parent=5 // pred_check_branch
      %504 = sbr.rel (%p502) target = $region44
    $region43: #{word_lstm_cell.1} parent=5 // pred_region
      %s505 = ssub.s32 %s10, 2
      // Predicated region
      $region45: #{word_lstm_cell.1} parent=43 // pred_check
        %p506 = pneg %p133
      $region46: #{word_lstm_cell.1} parent=43 // pred_check_branch
        %508 = sbr.rel (%p506) target = $region48
      $region47: #{word_lstm_cell.1} parent=43 // pred_region
        %s509 = smul.u32 2, %s16
        %p510 = scmp.lt.s32.totalorder %s509, 7
        %s511 = scalar_select %p510, %s509, 7
        %s512 = smul.addr %s511, 8
        %s513 = scalar_lea.vmem %s4, %s512
      $region48: #{word_lstm_cell.1} parent=43 // pred_fallthru
        _
    $region44: #{word_lstm_cell.1} parent=5 // pred_fallthru
      _
  $region6: #{word_lstm_cell.1} parent=0 // loop_footer
    %s14 = sadd.s32 1, %s10
  $region7: #{word_lstm_cell.1} parent=0 // loop_footer_branch
    %9 = sbr.rel target = $region3
  $region8: #{word_lstm_cell.1} parent=0 // loop_exit
    _

</llo_original>
